<compile_context>
chip_gen: v6e
topology: v6e:2x2x1
jax: 0.10.0
libtpu: 0.0.40
codegen_flags: <defaults>
</compile_context>

<pallas_src>
import jax
import jax.numpy as jnp
from jax.experimental import pallas as pl
from jax.experimental.pallas import tpu as pltpu

_NEG_BIG = -1e30  # "minus infinity" for padded action logits (exp underflows to 0)


def _round_up(n, m):
    return ((n + m - 1) // m) * m


def policy_net_kernel(x_ref, w1_ref, b1_ref, w2_ref, b2_ref, out_ref):
    # fc1 + ReLU: bf16 operands on the MXU, f32 accumulate / epilogue.
    # Shapes: [TB,S] @ [S,Hp] -> [TB,Hp]
    h = jnp.dot(x_ref[...], w1_ref[...], preferred_element_type=jnp.float32)
    h = jnp.maximum(h + b1_ref[...], 0.0)                       # [TB,Hp] f32

    # fc2 logits: [TB,Hp] @ [Hp,Ap] -> [TB,Ap]; activations cast back to the matmul
    # dtype for the MXU; padded action columns carry a -1e30 f32 bias so softmax
    # assigns them probability 0.
    logits = jnp.dot(h.astype(w2_ref.dtype), w2_ref[...],
                     preferred_element_type=jnp.float32) + b2_ref[...]

    # Numerically stable softmax along the lane-dense padded action axis (f32).
    m = jnp.max(logits, axis=1, keepdims=True)
    e = jnp.exp(logits - m)                       # padded lanes -> exp(-1e30 - m) = 0
    denom = jnp.sum(e, axis=1, keepdims=True)
    inv = pl.reciprocal(denom, approx=True)       # EUP slot
    inv = inv * (2.0 - denom * inv)               # one Newton step -> ~f32 exact
    probs = e * inv

    # Narrow store: only the real action columns leave VMEM.
    a_out = out_ref.shape[-1]
    out_ref[...] = probs[:, :a_out].astype(out_ref.dtype)


def policy_net_forward(x, w1, b1, w2, b2, *, block_b=2048, matmul_dtype=jnp.bfloat16):
    """x:[B,S], w1:[S,H], b1:[H] or [1,H], w2:[H,A], b2:[A] or [1,A] -> probs [B,A]."""
    B, S = x.shape
    H = w1.shape[1]
    A = w2.shape[1]

    H_pad = _round_up(H, 128)
    A_pad = _round_up(A, 128)

    B8 = _round_up(B, 8)
    TB = min(block_b, B8)
    # Prefer >=2 grid steps so both v7x TensorCores get work when B allows it.
    if B8 > 8 and pl.cdiv(B8, TB) < 2:
        TB = _round_up(pl.cdiv(B8, 2), 8)
    TB = max(TB, 8)
    grid = (pl.cdiv(B8, TB),)

    f32 = jnp.float32
    mmd = matmul_dtype

    # Activations: only a dtype cast + (at most 7 rows of) remainder padding;
    # no full zero-init + scatter copy of the batch stream.
    x_c = x.astype(mmd)
    if B8 != B:
        x_c = jnp.pad(x_c, ((0, B8 - B), (0, 0)))

    # Tiny weights/biases (padded once): zero-padded hidden dim (ReLU(0)=0 and zero
    # w2 rows -> no contribution), -1e30 bias on padded action columns.
    w1_p = jnp.zeros((S, H_pad), mmd).at[:, :H].set(w1.astype(mmd))
    b1_p = jnp.zeros((1, H_pad), f32).at[:, :H].set(b1.reshape(1, H).astype(f32))
    w2_p = jnp.zeros((H_pad, A_pad), mmd).at[:H, :A].set(w2.astype(mmd))
    b2_p = jnp.full((1, A_pad), _NEG_BIG, f32).at[:, :A].set(b2.reshape(1, A).astype(f32))

    # Explicit VMEM budget (v7x: 64 MiB physical / 32 MiB scoped default).
    mm_bytes = jnp.dtype(mmd).itemsize
    lane = 128
    x_buf = TB * max(lane, S) * mm_bytes                       # x block (lanes pad to 128)
    out_buf = TB * max(lane, A) * 4                            # narrow f32 output block
    w_bytes = (_round_up(S, 8) * H_pad + H_pad * A_pad) * mm_bytes + (H_pad + A_pad) * 8 * 4
    inter = 4 * TB * max(H_pad, A_pad) * 4                     # h/logits/e intermediates
    vmem_budget = int(min(max(2 * (x_buf + out_buf + w_bytes) + inter + (4 << 20), 8 << 20),
                          40 << 20))

    out = pl.pallas_call(
        policy_net_kernel,
        out_shape=jax.ShapeDtypeStruct((B8, A), f32),
        grid=grid,
        in_specs=[
            pl.BlockSpec((TB, S), lambda i: (i, 0)),        # batch-tiled activations
            pl.BlockSpec((S, H_pad), lambda i: (0, 0)),     # weights resident in VMEM
            pl.BlockSpec((1, H_pad), lambda i: (0, 0)),
            pl.BlockSpec((H_pad, A_pad), lambda i: (0, 0)),
            pl.BlockSpec((1, A_pad), lambda i: (0, 0)),
        ],
        out_specs=pl.BlockSpec((TB, A), lambda i: (i, 0)),  # narrow (A-wide) output
        compiler_params=pltpu.CompilerParams(
            dimension_semantics=("parallel",),
            vmem_limit_bytes=vmem_budget,
        ),
    )(x_c, w1_p, b1_p, w2_p, b2_p)

    return out if B8 == B else out[:B]


def init_params(key, state_dim, hidden_dim, action_dim):
    # Deterministic init mimicking PyTorch Linear default (U(-1/sqrt(fan_in), 1/sqrt(fan_in))).
    k1, k2, k3, k4 = jax.random.split(key, 4)
    lim1 = 1.0 / jnp.sqrt(jnp.float32(state_dim))
    lim2 = 1.0 / jnp.sqrt(jnp.float32(hidden_dim))
    w1 = jax.random.uniform(k1, (state_dim, hidden_dim), jnp.float32, -lim1, lim1)
    b1 = jax.random.uniform(k2, (1, hidden_dim), jnp.float32, -lim1, lim1)
    w2 = jax.random.uniform(k3, (hidden_dim, action_dim), jnp.float32, -lim2, lim2)
    b2 = jax.random.uniform(k4, (1, action_dim), jnp.float32, -lim2, lim2)
    return w1, b1, w2, b2


if __name__ == "__main__":
    state_dim, hidden_dim, action_dim = 4, 32, 2
    batch = 8

    key = jax.random.PRNGKey(0)
    kx, kp = jax.random.split(key)
    x = jax.random.normal(kx, (batch, state_dim), jnp.float32)
    w1, b1, w2, b2 = init_params(kp, state_dim, hidden_dim, action_dim)

    probs = policy_net_forward(x, w1, b1, w2, b2)
    probs = jax.block_until_ready(probs)

    # Pure-JAX reference with the same bf16 operand rounding as the kernel's MXU path.
    bf = lambda a: a.astype(jnp.bfloat16).astype(jnp.float32)
    h_ref = jnp.maximum(bf(x) @ bf(w1) + b1, 0.0)
    ref = jax.nn.softmax(bf(h_ref) @ bf(w2) + b2, axis=1)

    assert probs.shape == (batch, action_dim)
    assert bool(jnp.all(jnp.isfinite(probs)))
    assert jnp.allclose(probs, ref, atol=1e-3, rtol=1e-3)
    assert jnp.allclose(jnp.sum(probs, axis=1), 1.0, atol=1e-5)

    print("KERNEL_OK")
</pallas_src>

<mosaic_0001>
module attributes {stable_mosaic.version = 11 : i64} {
  func.func @policy_net_kernel(%arg0: i32, %arg1: memref<8x4xbf16, #tpu.memory_space<vmem>>, %arg2: memref<4x128xbf16, #tpu.memory_space<vmem>>, %arg3: memref<1x128xf32, #tpu.memory_space<vmem>>, %arg4: memref<128x128xbf16, #tpu.memory_space<vmem>>, %arg5: memref<1x128xf32, #tpu.memory_space<vmem>>, %arg6: memref<8x2xf32, #tpu.memory_space<vmem>>) attributes {dimension_semantics = [#tpu.dimension_semantics<parallel>], iteration_bounds = array<i64: 1>, scalar_prefetch = 0 : i64, scratch_operands = 0 : i64, tpu.core_type = #tpu.core_type<tc>, window_params = [{transform_indices = @transform_0, window_bounds = array<i64: 8, 4>}, {pipeline_mode = #tpu.pipeline_mode<synchronous>, transform_indices = @transform_1, window_bounds = array<i64: 4, 128>}, {pipeline_mode = #tpu.pipeline_mode<synchronous>, transform_indices = @transform_2, window_bounds = array<i64: 1, 128>}, {pipeline_mode = #tpu.pipeline_mode<synchronous>, transform_indices = @transform_3, window_bounds = array<i64: 128, 128>}, {pipeline_mode = #tpu.pipeline_mode<synchronous>, transform_indices = @transform_4, window_bounds = array<i64: 1, 128>}, {transform_indices = @transform_5, window_bounds = array<i64: 8, 2>}]} {
    %c0 = arith.constant 0 : index
    %c0_0 = arith.constant 0 : index
    %0 = vector.load %arg1[%c0, %c0_0] : memref<8x4xbf16, #tpu.memory_space<vmem>>, vector<8x4xbf16>
    %c0_1 = arith.constant 0 : index
    %c0_2 = arith.constant 0 : index
    %1 = vector.load %arg2[%c0_1, %c0_2] : memref<4x128xbf16, #tpu.memory_space<vmem>>, vector<4x128xbf16>
    %cst = arith.constant dense<0.000000e+00> : vector<8x128xf32>
    %2 = tpu.matmul %0, %1, %cst {dimension_numbers = #tpu.dot_dimension_numbers<[1], [0], [0], [1], [0, 0, 1, 1], [], []>} : vector<8x4xbf16>, vector<4x128xbf16>, vector<8x128xf32> -> vector<8x128xf32>
    %c0_3 = arith.constant 0 : index
    %c0_4 = arith.constant 0 : index
    %3 = vector.load %arg3[%c0_3, %c0_4] : memref<1x128xf32, #tpu.memory_space<vmem>>, vector<1x128xf32>
    %4 = vector.broadcast %3 : vector<1x128xf32> to vector<8x128xf32>
    %5 = arith.addf %2, %4 : vector<8x128xf32>
    %cst_5 = arith.constant 0.000000e+00 : f32
    %6 = vector.broadcast %cst_5 : f32 to vector<8x128xf32>
    %7 = arith.maximumf %5, %6 : vector<8x128xf32>
    %8 = arith.truncf %7 : vector<8x128xf32> to vector<8x128xbf16>
    %c0_6 = arith.constant 0 : index
    %c0_7 = arith.constant 0 : index
    %9 = vector.load %arg4[%c0_6, %c0_7] : memref<128x128xbf16, #tpu.memory_space<vmem>>, vector<128x128xbf16>
    %cst_8 = arith.constant dense<0.000000e+00> : vector<8x128xf32>
    %10 = tpu.matmul %8, %9, %cst_8 {dimension_numbers = #tpu.dot_dimension_numbers<[1], [0], [0], [1], [0, 0, 1, 1], [], []>} : vector<8x128xbf16>, vector<128x128xbf16>, vector<8x128xf32> -> vector<8x128xf32>
    %c0_9 = arith.constant 0 : index
    %c0_10 = arith.constant 0 : index
    %11 = vector.load %arg5[%c0_9, %c0_10] : memref<1x128xf32, #tpu.memory_space<vmem>>, vector<1x128xf32>
    %12 = vector.broadcast %11 : vector<1x128xf32> to vector<8x128xf32>
    %13 = arith.addf %10, %12 : vector<8x128xf32>
    %cst_11 = arith.constant dense<0xFF800000> : vector<8xf32>
    %14 = vector.multi_reduction <maximumf>, %13, %cst_11 [1] : vector<8x128xf32> to vector<8xf32>
    %15 = vector.shape_cast %14 : vector<8xf32> to vector<8x1xf32>
    %16 = vector.broadcast %15 : vector<8x1xf32> to vector<8x128xf32>
    %17 = arith.subf %13, %16 : vector<8x128xf32>
    %18 = math.exp %17 : vector<8x128xf32>
    %cst_12 = arith.constant dense<0.000000e+00> : vector<8xf32>
    %19 = vector.multi_reduction <add>, %18, %cst_12 [1] : vector<8x128xf32> to vector<8xf32>
    %20 = vector.shape_cast %19 : vector<8xf32> to vector<8x1xf32>
    %21 = tpu.reciprocal %20 {approx = true} : vector<8x1xf32> -> vector<8x1xf32>
    %22 = arith.mulf %20, %21 : vector<8x1xf32>
    %cst_13 = arith.constant 2.000000e+00 : f32
    %23 = vector.broadcast %cst_13 : f32 to vector<8x1xf32>
    %24 = arith.subf %23, %22 : vector<8x1xf32>
    %25 = arith.mulf %21, %24 : vector<8x1xf32>
    %26 = vector.broadcast %25 : vector<8x1xf32> to vector<8x128xf32>
    %27 = arith.mulf %18, %26 : vector<8x128xf32>
    %28 = vector.extract_strided_slice %27 {offsets = [0, 0], sizes = [8, 2], strides = [1, 1]} : vector<8x128xf32> to vector<8x2xf32>
    %c0_14 = arith.constant 0 : index
    %c0_15 = arith.constant 0 : index
    %29 = vector.load %arg6[%c0_14, %c0_15] : memref<8x2xf32, #tpu.memory_space<vmem>>, vector<8x2xf32>
    tpu.vector_store %arg6[%c0_14, %c0_15], %28 {strides = array<i32>} : memref<8x2xf32, #tpu.memory_space<vmem>>, vector<8x2xf32>,
    return
  }
  func.func @transform_0(%arg0: i32) -> (i32, i32) {
    %c0_i32 = arith.constant 0 : i32
    %c0_i32_0 = arith.constant 0 : i32
    return %arg0, %c0_i32 : i32, i32
  }
  func.func @transform_1(%arg0: i32) -> (i32, i32) {
    %c0_i32 = arith.constant 0 : i32
    %c0_i32_0 = arith.constant 0 : i32
    %c0_i32_1 = arith.constant 0 : i32
    return %c0_i32, %c0_i32_0 : i32, i32
  }
  func.func @transform_2(%arg0: i32) -> (i32, i32) {
    %c0_i32 = arith.constant 0 : i32
    %c0_i32_0 = arith.constant 0 : i32
    %c0_i32_1 = arith.constant 0 : i32
    return %c0_i32, %c0_i32_0 : i32, i32
  }
  func.func @transform_3(%arg0: i32) -> (i32, i32) {
    %c0_i32 = arith.constant 0 : i32
    %c0_i32_0 = arith.constant 0 : i32
    %c0_i32_1 = arith.constant 0 : i32
    return %c0_i32, %c0_i32_0 : i32, i32
  }
  func.func @transform_4(%arg0: i32) -> (i32, i32) {
    %c0_i32 = arith.constant 0 : i32
    %c0_i32_0 = arith.constant 0 : i32
    %c0_i32_1 = arith.constant 0 : i32
    return %c0_i32, %c0_i32_0 : i32, i32
  }
  func.func @transform_5(%arg0: i32) -> (i32, i32) {
    %c0_i32 = arith.constant 0 : i32
    %c0_i32_0 = arith.constant 0 : i32
    return %arg0, %c0_i32 : i32, i32
  }
}

</mosaic_0001>

<llo_original>
// kernel: tpu_custom_call.1
$region0: #{tpu_custom_call.1}
  #allocation0 [shape = 'u32[]', space=smem, size = 0x4, offset = 0x4, fixed_abs, tag = 'smem constant byte address 0x4 - core index']
  #allocation1 [shape = 'u32[144,128]{1,0:T(1,128)}', space=vmem, size = 0x12000, scoped, tag = 'internal scratch']
  %s0 = inlined_call_operand.vmem [shape: bf16[8,4], index: 0, kind: input, shape index: {}]
  %s1 = inlined_call_operand.vmem [shape: bf16[4,128], index: 1, kind: input, shape index: {}]
  %s2 = inlined_call_operand.vmem [shape: f32[1,128], index: 2, kind: input, shape index: {}]
  %s3 = inlined_call_operand.hbm [shape: bf16[128,128], index: 3, kind: input, shape index: {}]
  %s4 = inlined_call_operand.vmem [shape: f32[1,128], index: 4, kind: input, shape index: {}]
  %s5 = inlined_call_operand.vmem [shape: f32[8,2], index: 5, kind: output, shape index: {}]
  %s6 = sld [smem:[#allocation0]]
  $region34: #{tpu_custom_call.1} parent=0
    _
  %s8 = ssub.s32 1, %s6
  %s9 = scalar_select 0, %s8, %s6
  $region1: #{tpu_custom_call.1} parent=0
    #allocation2 [shape = 'u8[32768]{0}', space=vmem, size = 0x8000, scoped, tag = 'input window, operand 3, single buffered']
    #allocation3 [shape = 's32[1]{0}', space=sflag, size = 0x4, scoped, tag = 'scoped memory for tpu_custom_call.1']
    %10 = vsyncpa [#allocation3], 0
    // Predicated region
    $region2: #{tpu_custom_call.1} parent=1 // pred_check
      _
    $region3: #{tpu_custom_call.1} parent=1 // pred_check_branch
      %12 = sbr.rel (0) target = $region5
    $region4: #{tpu_custom_call.1} parent=1 // pred_region
      _
    $region5: #{tpu_custom_call.1} parent=1 // pred_fallthru
      _
    // Predicated region
    $region6: #{tpu_custom_call.1} parent=1 // pred_check
      _
    $region7: #{tpu_custom_call.1} parent=1 // pred_check_branch
      %14 = sbr.rel (0) target = $region9
    $region8: #{tpu_custom_call.1} parent=1 // pred_region
      _
    $region9: #{tpu_custom_call.1} parent=1 // pred_fallthru
      _
    // Predicated region
    $region10: #{tpu_custom_call.1} parent=1 // pred_check
      _
    $region11: #{tpu_custom_call.1} parent=1 // pred_check_branch
      %16 = sbr.rel (0) target = $region13
    $region12: #{tpu_custom_call.1} parent=1 // pred_region
      _
    $region13: #{tpu_custom_call.1} parent=1 // pred_fallthru
      _
    // Predicated region
    $region14: #{tpu_custom_call.1} parent=1 // pred_check
      _
    $region15: #{tpu_custom_call.1} parent=1 // pred_check_branch
      %18 = sbr.rel (0) target = $region17
    $region16: #{tpu_custom_call.1} parent=1 // pred_region
      %s20 = ssub.s32 1024, 1024
      %21 = vsyncadd [#allocation3], %s20
      %s22 = sshll.u32 [#allocation2], 4
      %s23 = int_to_ptr.vmem [resolvable:$true] %s22
      %28 = dma.hbm_to_vmem [thread:$0]  %s3, 1024, %s23, [#allocation3], 64, 64, 4
    $region17: #{tpu_custom_call.1} parent=1 // pred_fallthru
      _
    // Predicated region
    $region18: #{tpu_custom_call.1} parent=1 // pred_check
      _
    $region19: #{tpu_custom_call.1} parent=1 // pred_check_branch
      %30 = sbr.rel (0) target = $region21
    $region20: #{tpu_custom_call.1} parent=1 // pred_region
      _
    $region21: #{tpu_custom_call.1} parent=1 // pred_fallthru
      _
    // Predicated region
    $region22: #{tpu_custom_call.1} parent=1 // pred_check
      _
    $region23: #{tpu_custom_call.1} parent=1 // pred_check_branch
      %32 = sbr.rel (0) target = $region25
    $region24: #{tpu_custom_call.1} parent=1 // pred_region
      %33 = dma.done [#allocation3], 1024
    $region25: #{tpu_custom_call.1} parent=1 // pred_fallthru
      _
    %v35 = vld [vmem:[%s0] sm:$0xf]
    %v36 = vld [vmem:[%s1] sm:$0x3]
    %v37 = vld [vmem:[%s2] sm:$0x1]
    %v39 = vlaneseq
    %v40 = vshrl.u32 %v39, 7
    %v41 = vsub.s32 0, %v40
    %v42 = vrot.slane %v37, %v41
    %vm44 = vcmask 31744
    %v46 = vsel %vm44, %v35, 0
    %vm48 = vcmask 1041408
    %v50 = vsel %vm48, %v36, 0
    %52 = vmatprep.subr.bf16.mxu0 0
    %53 = vmatpush1.bf16.msra.mxu0 0
    %54 = vmatprep.subr.bf16.mxu0 0
    %55 = vmatpush1.bf16.msra.mxu0 0
    %56 = vmatprep.subr.bf16.mxu0 0
    %57 = vmatpush1.bf16.msra.mxu0 0
    %58 = vmatprep.subr.bf16.mxu0 0
    %59 = vmatpush1.bf16.msra.mxu0 0
    %60 = vmatprep.subr.bf16.mxu0 0
    %61 = vmatpush1.bf16.msra.mxu0 0
    %62 = vmatprep.subr.bf16.mxu0 0
    %63 = vmatpush1.bf16.msra.mxu0 0
    %64 = vmatprep.subr.bf16.mxu0 0
    %65 = vmatpush1.bf16.msra.mxu0 0
    %66 = vmatprep.subr.bf16.mxu0 0
    %67 = vmatpush1.bf16.msra.mxu0 %v50
    %68 = vmatprep.subr.bf16.mxu0 0
    %69 = vmatpush2.bf16.msra.mxu0 0
    %70 = vmatprep.subr.bf16.mxu0 0
    %71 = vmatpush2.bf16.msra.mxu0 0
    %72 = vmatprep.subr.bf16.mxu0 0
    %73 = vmatpush2.bf16.msra.mxu0 0
    %74 = vmatprep.subr.bf16.mxu0 0
    %75 = vmatpush2.bf16.msra.mxu0 0
    %76 = vmatprep.subr.bf16.mxu0 0
    %77 = vmatpush2.bf16.msra.mxu0 0
    %78 = vmatprep.subr.bf16.mxu0 0
    %79 = vmatpush2.bf16.msra.mxu0 0
    %80 = vmatprep.subr.bf16.mxu0 0
    %81 = vmatpush2.bf16.msra.mxu0 0
    %82 = vmatprep.subr.bf16.mxu0 0
    %83 = vmatpush2.bf16.msra.mxu0 0
    %84 = vmatprep.mubr.bf16.mxu0 0
    %85 = vmatmul.mubr.bf16.gmra.mxu0 %v46
    %v86 = vpop.f32.mrf.mxu0
    %v87 = vadd.f32 %v42, %v86
    %v88 = vpop.f32.mrf.mxu0
    %v89 = vpop.f32.mrf.mxu0
    %v90 = vpop.f32.mrf.mxu0
    %91 = vdwg.mxu0
    %v92 = vmax.f32 %v87, 0.0
    %v93 = vpack.c.bf16 %v92, %v92
    %v94 = vld [vmem:[#allocation2] sm:$0xf]
    %v95 = vld [vmem:[#allocation2 + $0x4] sm:$0xf]
    %v96 = vld [vmem:[#allocation2 + $0x8] sm:$0xf]
    %v97 = vld [vmem:[#allocation2 + $0xc] sm:$0xf]
    %v98 = vld [vmem:[#allocation2 + $0x10] sm:$0xf]
    %v99 = vld [vmem:[#allocation2 + $0x14] sm:$0xf]
    %v100 = vld [vmem:[#allocation2 + $0x18] sm:$0xf]
    %v101 = vld [vmem:[#allocation2 + $0x1c] sm:$0xf]
    %v102 = vld [vmem:[#allocation2 + $0x20] sm:$0xf]
    %v103 = vld [vmem:[#allocation2 + $0x24] sm:$0xf]
    %v104 = vld [vmem:[#allocation2 + $0x28] sm:$0xf]
    %v105 = vld [vmem:[#allocation2 + $0x2c] sm:$0xf]
    %v106 = vld [vmem:[#allocation2 + $0x30] sm:$0xf]
    %v107 = vld [vmem:[#allocation2 + $0x34] sm:$0xf]
    %v108 = vld [vmem:[#allocation2 + $0x38] sm:$0xf]
    %v109 = vld [vmem:[#allocation2 + $0x3c] sm:$0xf]
    %v110 = vld [vmem:[%s4] sm:$0x1]
    %v112 = vlaneseq
    %v113 = vshrl.u32 %v112, 7
    %v114 = vsub.s32 0, %v113
    %v115 = vrot.slane %v110, %v114
    %v133 = vunpack.c.l.b16 %v94
    %v134 = vunpack.c.l.b16 %v95
    %v135 = vunpack.c.l.b16 %v96
    %v136 = vunpack.c.l.b16 %v97
    %v137 = vunpack.c.l.b16 %v98
    %v138 = vunpack.c.l.b16 %v99
    %v139 = vunpack.c.l.b16 %v100
    %v140 = vunpack.c.l.b16 %v101
    %v141 = vunpack.c.l.b16 %v102
    %v142 = vunpack.c.l.b16 %v103
    %v143 = vunpack.c.l.b16 %v104
    %v144 = vunpack.c.l.b16 %v105
    %v145 = vunpack.c.l.b16 %v106
    %v146 = vunpack.c.l.b16 %v107
    %v147 = vunpack.c.l.b16 %v108
    %v148 = vunpack.c.l.b16 %v109
    %v149 = vpack.c.b16 %v134, %v133
    %v150 = vpack.c.b16 %v136, %v135
    %v151 = vpack.c.b16 %v138, %v137
    %v152 = vpack.c.b16 %v140, %v139
    %v153 = vpack.c.b16 %v142, %v141
    %v154 = vpack.c.b16 %v144, %v143
    %v155 = vpack.c.b16 %v146, %v145
    %v156 = vpack.c.b16 %v148, %v147
    %165 = vmatprep.subr.bf16.mxu0 0
    %166 = vmatpush1.bf16.msra.mxu0 %v156
    %167 = vmatprep.subr.bf16.mxu0 0
    %168 = vmatpush1.bf16.msra.mxu0 %v155
    %169 = vmatprep.subr.bf16.mxu0 0
    %170 = vmatpush1.bf16.msra.mxu0 %v154
    %171 = vmatprep.subr.bf16.mxu0 0
    %172 = vmatpush1.bf16.msra.mxu0 %v153
    %173 = vmatprep.subr.bf16.mxu0 0
    %174 = vmatpush1.bf16.msra.mxu0 %v152
    %175 = vmatprep.subr.bf16.mxu0 0
    %176 = vmatpush1.bf16.msra.mxu0 %v151
    %177 = vmatprep.subr.bf16.mxu0 0
    %178 = vmatpush1.bf16.msra.mxu0 %v150
    %179 = vmatprep.subr.bf16.mxu0 0
    %180 = vmatpush1.bf16.msra.mxu0 %v149
    %181 = vmatprep.subr.bf16.mxu0 0
    %182 = vmatpush2.bf16.msra.mxu0 0
    %183 = vmatprep.subr.bf16.mxu0 0
    %184 = vmatpush2.bf16.msra.mxu0 0
    %185 = vmatprep.subr.bf16.mxu0 0
    %186 = vmatpush2.bf16.msra.mxu0 0
    %187 = vmatprep.subr.bf16.mxu0 0
    %188 = vmatpush2.bf16.msra.mxu0 0
    %189 = vmatprep.subr.bf16.mxu0 0
    %190 = vmatpush2.bf16.msra.mxu0 0
    %191 = vmatprep.subr.bf16.mxu0 0
    %192 = vmatpush2.bf16.msra.mxu0 0
    %193 = vmatprep.subr.bf16.mxu0 0
    %194 = vmatpush2.bf16.msra.mxu0 0
    %195 = vmatprep.subr.bf16.mxu0 0
    %196 = vmatpush2.bf16.msra.mxu0 0
    %197 = vmatprep.mubr.bf16.mxu0 0
    %198 = vmatmul.mubr.bf16.gmra.mxu0 %v93
    %v199 = vpop.f32.mrf.mxu0
    %v200 = vadd.f32 %v115, %v199
    %v201 = vpop.f32.mrf.mxu0
    %v202 = vpop.f32.mrf.mxu0
    %v203 = vpop.f32.mrf.mxu0
    %204 = vdwg.mxu0
    %205 = vmax.xlane.f32.xlu0 %v200
    %v206 = vpop.xlane.xlu0 %205
    %v207 = vsub.f32 %v200, %v206
    %v208 = vmul.f32 %v207, 1.442695
    %v209 = vpow.pop %v208
    %210 = vadd.xlane.f32.xlu0 %v209
    %v211 = vpop.xlane.xlu0 %210
    %v212 = vrcp.pop %v211
    %v213 = vmul.f32 %v211, %v212
    %v214 = vsub.f32 2.0, %v213
    %v215 = vmul.f32 %v212, %v214
    %v216 = vmul.f32 %v209, %v215
    %vm217 = vcmask 15360
    %218 = vst.msk [vmem:[%s5] sm:$0xff] %vm217, %v216
    // Predicated region
    $region26: #{tpu_custom_call.1} parent=1 // pred_check
      _
    $region27: #{tpu_custom_call.1} parent=1 // pred_check_branch
      %220 = sbr.rel (0) target = $region29
    $region28: #{tpu_custom_call.1} parent=1 // pred_region
      _
    $region29: #{tpu_custom_call.1} parent=1 // pred_fallthru
      _
    // Predicated region
    $region30: #{tpu_custom_call.1} parent=1 // pred_check
      _
    $region31: #{tpu_custom_call.1} parent=1 // pred_check_branch
      %222 = sbr.rel (0) target = $region33
    $region32: #{tpu_custom_call.1} parent=1 // pred_region
      _
    $region33: #{tpu_custom_call.1} parent=1 // pred_fallthru
      _
    %223 = vsyncpa [#allocation3], 1

</llo_original>
